<compile_context>
chip_gen: v7x
topology: tpu7x:2x2x1
jax: 0.10.0
libtpu: 0.0.40
codegen_flags: <defaults>
</compile_context>

<pallas_src>
import functools

import jax
import jax.numpy as jnp
from jax.experimental import pallas as pl
from jax.experimental.pallas import tpu as pltpu


# ------------------------- elementwise loss functions ------------------------


def make_hinge_loss(margin):
    margin = float(margin)

    def hinge(pred, target):
        return jnp.maximum(jnp.abs(pred - target) - margin, 0.0)

    return hinge


def l1_loss(pred, target):
    return jnp.abs(pred - target)


def make_weighted_loss_fn(beta, loss_1_fn, loss_2_fn):
    """Generic combiner matching the PyTorch module: beta*l1 + (1-beta)*l2."""
    beta = float(beta)  # must be a Python float (baked at trace time)

    def combined(p, t):
        return beta * loss_1_fn(p, t) + (1.0 - beta) * loss_2_fn(p, t)

    return combined


def make_fused_hinge_l1(beta, margin):
    """Algebraically fused beta*hinge + (1-beta)*L1.

    d = |p - t|;  beta*max(d - margin, 0) + (1 - beta)*d == d - beta*min(d, margin)
    """
    beta = float(beta)
    margin = float(margin)

    def fused(p, t):
        d = jnp.abs(p - t)
        return d - beta * jnp.minimum(d, margin)

    return fused


# --------------------------------- kernels ------------------------------------


def _elementwise_kernel(pred_ref, target_ref, out_ref, *, loss_fn, compute_dtype):
    p = pred_ref[...].astype(compute_dtype)
    t = target_ref[...].astype(compute_dtype)
    out_ref[...] = loss_fn(p, t).astype(out_ref.dtype)


def _mean_kernel(pred_ref, target_ref, out_ref, acc_ref, *,
                 loss_fn, compute_dtype, n_valid, block_rows, lanes):
    i = pl.program_id(0)

    @pl.when(i == 0)
    def _():
        acc_ref[...] = jnp.zeros_like(acc_ref)

    p = pred_ref[...].astype(compute_dtype)
    t = target_ref[...].astype(compute_dtype)
    val = loss_fn(p, t).astype(jnp.float32)

    # Mask wrapper padding and the garbage region of a ragged final block
    # (global flat index >= n_valid).  Safe for arbitrary loss fns (select
    # fully suppresses NaN/Inf produced on invalid elements).
    row = jax.lax.broadcasted_iota(jnp.int32, val.shape, 0) + i * block_rows
    col = jax.lax.broadcasted_iota(jnp.int32, val.shape, 1)
    valid = (row * lanes + col) < n_valid
    val = jnp.where(valid, val, 0.0)

    acc_ref[...] = acc_ref[...] + jnp.sum(val)

    @pl.when(i == pl.num_programs(0) - 1)
    def _():
        out_ref[...] = (acc_ref[...] * (1.0 / n_valid)).astype(out_ref.dtype)


# -------------------------------- wrapper ------------------------------------


def _pick_layout(n):
    """Lane-dense (rows, L) layout.  Prefer an L that divides n exactly (no
    padding pass over HBM); fall back to padding to a multiple of 128."""
    for L in (1024, 512, 256, 128):
        if n % L == 0:
            return L, 0
    L = 128
    return L, (-n) % L


def weighted_loss(pred, target, *, loss_fn, reduction="none", compute_dtype=None):
    assert pred.shape == target.shape
    assert pred.dtype == target.dtype
    orig_shape = pred.shape
    n = pred.size
    itemsize = jnp.dtype(pred.dtype).itemsize
    if compute_dtype is None:
        # bf16 inputs compute in bf16 (v6e/v7x VPU is bf16-native); f32 in f32.
        # TODO(synk): on v5e pass compute_dtype=jnp.float32 for bf16 inputs.
        compute_dtype = pred.dtype

    L, pad = _pick_layout(n)
    pred_flat = pred.reshape(-1)
    target_flat = target.reshape(-1)
    if pad:
        # Rare path (n not a multiple of 128): one extra HBM pass over inputs.
        pred_flat = jnp.pad(pred_flat, (0, pad))
        target_flat = jnp.pad(target_flat, (0, pad))
    rows = (n + pad) // L
    pred2 = pred_flat.reshape(rows, L)
    target2 = target_flat.reshape(rows, L)

    # Either TM == rows (single block, "block == full dim" rule) or TM == 512
    # (multiple of every dtype's sublane packing).  Ragged final block is fine.
    TM = min(512, rows)
    grid = (pl.cdiv(rows, TM),)

    in_specs = [
        pl.BlockSpec((TM, L), lambda i: (i, 0)),
        pl.BlockSpec((TM, L), lambda i: (i, 0)),
    ]

    if reduction == "none":
        kernel = functools.partial(
            _elementwise_kernel, loss_fn=loss_fn, compute_dtype=compute_dtype)
        out2 = pl.pallas_call(
            kernel,
            out_shape=jax.ShapeDtypeStruct((rows, L), pred.dtype),
            grid=grid,
            in_specs=in_specs,
            out_specs=pl.BlockSpec((TM, L), lambda i: (i, 0)),
            compiler_params=pltpu.CompilerParams(
                dimension_semantics=("parallel",)),
            cost_estimate=pl.CostEstimate(
                flops=4 * n, transcendentals=0,
                bytes_accessed=3 * n * itemsize),
        )(pred2, target2)
        out_flat = out2.reshape(-1)
        if pad:
            out_flat = out_flat[:n]
        return out_flat.reshape(orig_shape)

    elif reduction == "mean":
        # Fused mean: no full-size output write (~8 B/elem instead of ~12).
        kernel = functools.partial(
            _mean_kernel, loss_fn=loss_fn, compute_dtype=compute_dtype,
            n_valid=n, block_rows=TM, lanes=L)
        out = pl.pallas_call(
            kernel,
            out_shape=jax.ShapeDtypeStruct((1, 1), jnp.float32),
            grid=grid,
            in_specs=in_specs,
            out_specs=pl.BlockSpec((1, 1), lambda i: (0, 0)),
            scratch_shapes=[pltpu.VMEM((1, 1), jnp.float32)],
            compiler_params=pltpu.CompilerParams(
                dimension_semantics=("arbitrary",)),
            cost_estimate=pl.CostEstimate(
                flops=5 * n, transcendentals=0,
                bytes_accessed=2 * n * itemsize + 4),
        )(pred2, target2)
        return out[0, 0]

    else:
        raise ValueError(f"unsupported reduction: {reduction}")


# ------------------------------- reference -----------------------------------


def weighted_loss_ref(pred, target, beta, margin):
    hinge = jnp.maximum(jnp.abs(pred - target) - margin, 0.0)
    l1 = jnp.abs(pred - target)
    return beta * hinge + (1.0 - beta) * l1


# --------------------------------- demo --------------------------------------


if __name__ == "__main__":
    key = jax.random.PRNGKey(0)
    k1, k2 = jax.random.split(key)

    # Small NCHW-like shape consistent with the module's usage.
    shape = (2, 4, 16, 16)
    pred = jax.random.normal(k1, shape, dtype=jnp.float32)
    target = jax.random.normal(k2, shape, dtype=jnp.float32)

    beta = 0.7
    margin = 0.5

    # Algebraically fused beta*hinge + (1-beta)*L1 (identical semantics).
    fused_fn = make_fused_hinge_l1(beta, margin)
    # Generic (unfused) combiner, if the loss pair has no closed fused form:
    #   fused_fn = make_weighted_loss_fn(beta, make_hinge_loss(margin), l1_loss)

    out = weighted_loss(pred, target, loss_fn=fused_fn, reduction="none")
    out_mean = weighted_loss(pred, target, loss_fn=fused_fn, reduction="mean")
    out, out_mean = jax.block_until_ready((out, out_mean))

    ref = weighted_loss_ref(pred, target, beta, margin)
    assert out.shape == shape
    assert jnp.allclose(out, ref, atol=1e-6, rtol=1e-6), "elementwise mismatch"
    assert jnp.allclose(out_mean, jnp.mean(ref), atol=1e-5, rtol=1e-5), "mean mismatch"

    print("KERNEL_OK")
</pallas_src>

<mosaic_0001>
module attributes {stable_mosaic.version = 11 : i64} {
  func.func @_elementwise_kernel(%arg0: i32, %arg1: memref<2x1024xf32, #tpu.memory_space<vmem>>, %arg2: memref<2x1024xf32, #tpu.memory_space<vmem>>, %arg3: memref<2x1024xf32, #tpu.memory_space<vmem>>) attributes {dimension_semantics = [#tpu.dimension_semantics<parallel>], iteration_bounds = array<i64: 1>, scalar_prefetch = 0 : i64, scratch_operands = 0 : i64, tpu.core_type = #tpu.core_type<tc>, window_params = [{transform_indices = @transform_0, window_bounds = array<i64: 2, 1024>}, {transform_indices = @transform_1, window_bounds = array<i64: 2, 1024>}, {transform_indices = @transform_2, window_bounds = array<i64: 2, 1024>}]} {
    %c0 = arith.constant 0 : index
    %c0_0 = arith.constant 0 : index
    %0 = vector.load %arg1[%c0, %c0_0] : memref<2x1024xf32, #tpu.memory_space<vmem>>, vector<2x1024xf32>
    %c0_1 = arith.constant 0 : index
    %c0_2 = arith.constant 0 : index
    %1 = vector.load %arg2[%c0_1, %c0_2] : memref<2x1024xf32, #tpu.memory_space<vmem>>, vector<2x1024xf32>
    %2 = arith.subf %0, %1 : vector<2x1024xf32>
    %3 = math.absf %2 : vector<2x1024xf32>
    %cst = arith.constant 5.000000e-01 : f32
    %4 = vector.broadcast %cst : f32 to vector<2x1024xf32>
    %5 = arith.minimumf %3, %4 : vector<2x1024xf32>
    %cst_3 = arith.constant 0.699999988 : f32
    %6 = vector.broadcast %cst_3 : f32 to vector<2x1024xf32>
    %7 = arith.mulf %6, %5 : vector<2x1024xf32>
    %8 = arith.subf %3, %7 : vector<2x1024xf32>
    %c0_4 = arith.constant 0 : index
    %c0_5 = arith.constant 0 : index
    %9 = vector.load %arg3[%c0_4, %c0_5] : memref<2x1024xf32, #tpu.memory_space<vmem>>, vector<2x1024xf32>
    tpu.vector_store %arg3[%c0_4, %c0_5], %8 {strides = array<i32>} : memref<2x1024xf32, #tpu.memory_space<vmem>>, vector<2x1024xf32>,
    return
  }
  func.func @transform_0(%arg0: i32) -> (i32, i32) {
    %c0_i32 = arith.constant 0 : i32
    %c0_i32_0 = arith.constant 0 : i32
    return %arg0, %c0_i32 : i32, i32
  }
  func.func @transform_1(%arg0: i32) -> (i32, i32) {
    %c0_i32 = arith.constant 0 : i32
    %c0_i32_0 = arith.constant 0 : i32
    return %arg0, %c0_i32 : i32, i32
  }
  func.func @transform_2(%arg0: i32) -> (i32, i32) {
    %c0_i32 = arith.constant 0 : i32
    %c0_i32_0 = arith.constant 0 : i32
    return %arg0, %c0_i32 : i32, i32
  }
}

</mosaic_0001>

<llo_original>
// kernel: tpu_custom_call.1
$region0: #{tpu_custom_call.1}
  #allocation0 [shape = 'u32[]', space=smem, size = 0x4, offset = 0x4, fixed_abs, tag = 'smem constant byte address 0x4 - core index']
  #allocation1 [shape = 'u32[144,128]{1,0:T(1,128)}', space=vmem, size = 0x12000, scoped, tag = 'internal scratch']
  %s0 = inlined_call_operand.hbm [shape: f32[2,1024], index: 0, kind: input, shape index: {}]
  %s1 = inlined_call_operand.hbm [shape: f32[2,1024], index: 1, kind: input, shape index: {}]
  %s2 = inlined_call_operand.hbm [shape: f32[2,1024], index: 2, kind: output, shape index: {}]
  %s3 = sld [smem:[#allocation0]]
  $region26: #{tpu_custom_call.1} parent=0
    _
  %s5 = ssub.s32 1, %s3
  %s6 = scalar_select 0, %s5, %s3
  $region1: #{tpu_custom_call.1} parent=0
    #allocation2 [shape = 'u8[8192]{0}', space=vmem, size = 0x2000, scoped, tag = 'input window, operand 0, single buffered']
    #allocation3 [shape = 's32[1]{0}', space=sflag, size = 0x4, scoped, tag = 'scoped memory for tpu_custom_call.1']
    #allocation4 [shape = 's32[1]{0}', space=sflag, size = 0x4, scoped, tag = 'scoped memory for tpu_custom_call.1']
    #allocation5 [shape = 'u8[8192]{0}', space=vmem, size = 0x2000, scoped, tag = 'input window, operand 1, single buffered']
    #allocation6 [shape = 's32[1]{0}', space=sflag, size = 0x4, scoped, tag = 'scoped memory for tpu_custom_call.1']
    #allocation7 [shape = 'u8[8192]{0}', space=vmem, size = 0x2000, scoped, tag = 'output window, operand 0, single buffered']
    %7 = vsyncpa [#allocation3], 0
    %8 = vsyncpa [#allocation6], 0
    %9 = vsyncpa [#allocation4], 0
    // Predicated region
    $region2: #{tpu_custom_call.1} parent=1 // pred_check
      _
    $region3: #{tpu_custom_call.1} parent=1 // pred_check_branch
      %11 = sbr.rel (0) target = $region5
    $region4: #{tpu_custom_call.1} parent=1 // pred_region
      %s13 = ssub.s32 256, 256
      %14 = vsyncadd [#allocation3], %s13
      %s16 = sshll.u32 [#allocation2], 4
      %s17 = int_to_ptr.vmem [resolvable:$true] %s16
      %19 = dma.hbm_to_vmem [thread:$0]  %s0, 256, %s17, [#allocation3]
    $region5: #{tpu_custom_call.1} parent=1 // pred_fallthru
      _
    // Predicated region
    $region6: #{tpu_custom_call.1} parent=1 // pred_check
      _
    $region7: #{tpu_custom_call.1} parent=1 // pred_check_branch
      %21 = sbr.rel (0) target = $region9
    $region8: #{tpu_custom_call.1} parent=1 // pred_region
      %s23 = ssub.s32 256, 256
      %24 = vsyncadd [#allocation6], %s23
      %s26 = sshll.u32 [#allocation5], 4
      %s27 = int_to_ptr.vmem [resolvable:$true] %s26
      %29 = dma.hbm_to_vmem [thread:$0]  %s1, 256, %s27, [#allocation6]
    $region9: #{tpu_custom_call.1} parent=1 // pred_fallthru
      _
    // Predicated region
    $region10: #{tpu_custom_call.1} parent=1 // pred_check
      _
    $region11: #{tpu_custom_call.1} parent=1 // pred_check_branch
      %31 = sbr.rel (0) target = $region13
    $region12: #{tpu_custom_call.1} parent=1 // pred_region
      %32 = dma.done [#allocation3], 256
    $region13: #{tpu_custom_call.1} parent=1 // pred_fallthru
      _
    // Predicated region
    $region14: #{tpu_custom_call.1} parent=1 // pred_check
      _
    $region15: #{tpu_custom_call.1} parent=1 // pred_check_branch
      %34 = sbr.rel (0) target = $region17
    $region16: #{tpu_custom_call.1} parent=1 // pred_region
      %35 = dma.done [#allocation6], 256
    $region17: #{tpu_custom_call.1} parent=1 // pred_fallthru
      _
    %v36 = vld [vmem:[#allocation2] sm:$0xff]
    %v37 = vld [vmem:[#allocation2 + $0x8] sm:$0xff]
    %v38 = vld [vmem:[#allocation5] sm:$0xff]
    %v39 = vld [vmem:[#allocation5 + $0x8] sm:$0xff]
    %v40 = vsub.f32 %v36, %v38
    %v41 = vsub.f32 %v37, %v39
    %v42 = vand.u32 2147483647, %v40
    %v43 = vand.u32 2147483647, %v41
    %v44 = vmin.f32 %v42, 0.5
    %v45 = vmin.f32 %v43, 0.5
    %v46 = vmul.f32 %v44, 0.7
    %v47 = vmul.f32 %v45, 0.7
    %v48 = vsub.f32 %v42, %v46
    %v49 = vsub.f32 %v43, %v47
    %50 = vst [vmem:[#allocation7] sm:$0xff] %v48
    %51 = vst [vmem:[#allocation7 + $0x8] sm:$0xff] %v49
    // Predicated region
    $region18: #{tpu_custom_call.1} parent=1 // pred_check
      _
    $region19: #{tpu_custom_call.1} parent=1 // pred_check_branch
      %53 = sbr.rel (0) target = $region21
    $region20: #{tpu_custom_call.1} parent=1 // pred_region
      %s55 = ssub.s32 256, 256
      %56 = vsyncadd [#allocation4], %s55
      %s58 = sshll.u32 [#allocation7], 4
      %s59 = int_to_ptr.vmem [resolvable:$true] %s58
      %61 = dma.vmem_to_hbm [thread:$0]  %s59, 256, %s2, [#allocation4]
    $region21: #{tpu_custom_call.1} parent=1 // pred_fallthru
      _
    // Predicated region
    $region22: #{tpu_custom_call.1} parent=1 // pred_check
      _
    $region23: #{tpu_custom_call.1} parent=1 // pred_check_branch
      %63 = sbr.rel (0) target = $region25
    $region24: #{tpu_custom_call.1} parent=1 // pred_region
      %64 = dma.done [#allocation4], 256
    $region25: #{tpu_custom_call.1} parent=1 // pred_fallthru
      _
    %65 = vsyncpa [#allocation3], 1
    %66 = vsyncpa [#allocation6], 1
    %67 = vsyncpa [#allocation4], 1

</llo_original>
